<compile_context>
chip_gen: v5e
topology: v5e:2x2
jax: 0.10.0
libtpu: 0.0.40
codegen_flags: <defaults>
</compile_context>

<pallas_src>
import math

import jax
import jax.numpy as jnp
from jax.experimental import pallas as pl
from jax.experimental.pallas import tpu as pltpu


def _round_up(x, n):
    return ((x + n - 1) // n) * n


def _sublane(dtype):
    # (8, 128) tiling for 4-byte types, (16, 128) for 2-byte, (32, 128) for 1-byte.
    itemsize = jnp.dtype(dtype).itemsize
    return max(8, 32 // max(1, itemsize))


def make_scale1d_weights(n_modes, dtype=jnp.float32):
    # Deterministic init exactly as in the PyTorch module: ws[0, i] = i + 1.
    return (jnp.arange(n_modes, dtype=dtype) + 1.0).reshape(1, n_modes)


_COMPILER_PARAMS = pltpu.CompilerParams(dimension_semantics=("parallel",))


# ---------------------------------------------------------------------------
# Kernels
# ---------------------------------------------------------------------------

def _scale1d_packed_kernel(x_ref, w_ref, o_ref):
    # x_ref: (tm_p, pack)   -- each kernel row holds `pack` consecutive logical x values
    # w_ref: (pack, 128)    -- block-diagonal copies of (lane-padded) ws, resident
    # o_ref: (tm_p, 128)    -- lane-dense output
    # Single MXU contraction per tile; result pops straight to the output store.
    o_ref[...] = jnp.dot(
        x_ref[...], w_ref[...], preferred_element_type=jnp.float32
    ).astype(o_ref.dtype)


def _scale1d_wide_kernel(x_ref, w_ref, o_ref):
    # x_ref: (tm, 1), w_ref: (1, n_lanes), o_ref: (tm, n_lanes); n_lanes % 128 == 0.
    x = x_ref[...].astype(jnp.float32)
    w = w_ref[...].astype(jnp.float32)
    o_ref[...] = (x * w).astype(o_ref.dtype)


# ---------------------------------------------------------------------------
# Tile selection
# ---------------------------------------------------------------------------

def _pick_tile(m_rows, sub, row_bytes_per_buffer, vmem_budget, min_split_rows=512):
    """Rows per grid step: as big as the double-buffered VMEM budget allows, but split
    mid-sized problems into >= 2 steps so v7x megacore can use both TensorCores."""
    cap = max(sub, (vmem_budget // (2 * row_bytes_per_buffer)) // sub * sub)
    tm = min(cap, m_rows)
    if m_rows >= 2 * min_split_rows and pl.cdiv(m_rows, tm) < 2:
        tm = _round_up(pl.cdiv(m_rows, 2), sub)
    return tm


# ---------------------------------------------------------------------------
# Paths
# ---------------------------------------------------------------------------

def _scale1d_packed(x_flat, ws, m, n_modes, dtype, max_block_rows, vmem_budget):
    """n_modes <= 64: lane-dense packed MXU path."""
    sub = _sublane(dtype)
    isz = jnp.dtype(dtype).itemsize
    n_pad = pl.next_power_of_2(n_modes)      # divisor of 128 since n_modes <= 64
    pack = 128 // n_pad

    # Packed rows, aligned to the dtype sublane multiple (tiny pad, < sub*pack elems).
    m_rows = _round_up(pl.cdiv(m, pack), sub)
    # VMEM per row per buffer: x block lane-padded to 128 + 128-wide output block.
    tm_p = _pick_tile(m_rows, sub, 256 * isz, vmem_budget)
    if max_block_rows is not None:
        tm_p = min(tm_p, max(sub, ((max_block_rows // pack) // sub) * sub))

    n_total = m_rows * pack
    x_p = x_flat if n_total == m else jnp.pad(x_flat, (0, n_total - m))
    x_packed = x_p.reshape(m_rows, pack)

    # Block-diagonal weights: w_packed[j, j*n_pad : j*n_pad + n_modes] = ws.
    w_row = jnp.zeros((n_pad,), dtype).at[:n_modes].set(ws.reshape(-1).astype(dtype))
    w_packed = (jnp.eye(pack, dtype=dtype)[:, :, None] * w_row[None, None, :]
                ).reshape(pack, 128)

    grid = (pl.cdiv(m_rows, tm_p),)
    cost = pl.CostEstimate(
        flops=2 * m_rows * pack * 128,
        transcendentals=0,
        bytes_accessed=(m_rows * pack + pack * 128 + m_rows * 128) * isz,
    )
    out_packed = pl.pallas_call(
        _scale1d_packed_kernel,
        out_shape=jax.ShapeDtypeStruct((m_rows, 128), dtype),
        grid=grid,
        in_specs=[
            pl.BlockSpec((tm_p, pack), lambda i: (i, 0)),
            pl.BlockSpec((pack, 128), lambda i: (0, 0)),   # resident
        ],
        out_specs=pl.BlockSpec((tm_p, 128), lambda i: (i, 0)),
        compiler_params=_COMPILER_PARAMS,
        cost_estimate=cost,
    )(x_packed, w_packed)

    # (m_rows, pack*n_pad) -> (m_rows*pack, n_pad) is a contiguous (free) reshape.
    out2d = out_packed.reshape(m_rows * pack, n_pad)
    if n_total != m or n_pad != n_modes:
        out2d = out2d[:m, :n_modes]          # only when row / lane padding was needed
    return out2d


def _scale1d_wide(x_flat, ws, m, n_modes, dtype, max_block_rows, vmem_budget):
    """n_modes > 64: lane-dense broadcast-multiply path (ws zero-padded to 128k lanes)."""
    sub = _sublane(dtype)
    isz = jnp.dtype(dtype).itemsize
    n_lanes = _round_up(n_modes, 128)

    m_p = _round_up(m, sub)
    tm = _pick_tile(m_p, sub, (128 + n_lanes) * isz, vmem_budget)
    if max_block_rows is not None:
        tm = min(tm, max(sub, (max_block_rows // sub) * sub))

    x_p = x_flat if m_p == m else jnp.pad(x_flat, (0, m_p - m))
    x2d = x_p.reshape(m_p, 1)
    w2d = jnp.zeros((1, n_lanes), dtype).at[:, :n_modes].set(
        ws.reshape(1, n_modes).astype(dtype))

    grid = (pl.cdiv(m_p, tm),)
    cost = pl.CostEstimate(
        flops=m_p * n_lanes,
        transcendentals=0,
        bytes_accessed=(m_p + n_lanes + m_p * n_lanes) * isz,
    )
    out2d = pl.pallas_call(
        _scale1d_wide_kernel,
        out_shape=jax.ShapeDtypeStruct((m_p, n_lanes), dtype),
        grid=grid,
        in_specs=[
            pl.BlockSpec((tm, 1), lambda i: (i, 0)),
            pl.BlockSpec((1, n_lanes), lambda i: (0, 0)),  # resident
        ],
        out_specs=pl.BlockSpec((tm, n_lanes), lambda i: (i, 0)),
        compiler_params=_COMPILER_PARAMS,
        cost_estimate=cost,
    )(x2d, w2d)

    if m_p != m or n_lanes != n_modes:
        out2d = out2d[:m, :n_modes]
    return out2d


# ---------------------------------------------------------------------------
# Public wrapper
# ---------------------------------------------------------------------------

def scale1d(x, ws, *, max_block_rows=None, small_fallback_rows=2048,
            vmem_budget_bytes=8 * 1024 * 1024):
    """x: (..., 1), ws: (1, n_modes) -> (..., n_modes)  (== x @ ws).

    max_block_rows: optional cap on logical rows per grid step (testing / VMEM tuning).
    small_fallback_rows: below this row count, skip Pallas and let XLA fuse the
        broadcast (launch + per-step overhead dominates tiny problems).
    """
    assert x.shape[-1] == 1, "Scale1D expects trailing dim 1 (matmul with (1, n_modes))"
    n_modes = ws.shape[-1]
    lead = x.shape[:-1]
    m = math.prod(lead) if lead else 1
    dtype = x.dtype

    if m == 0:
        return jnp.zeros((*lead, n_modes), dtype)

    if m < small_fallback_rows:
        return x * ws.reshape((1,) * (x.ndim - 1) + (n_modes,)).astype(dtype)

    x_flat = x.reshape(m)
    if n_modes <= 64:
        out2d = _scale1d_packed(x_flat, ws, m, n_modes, dtype,
                                max_block_rows, vmem_budget_bytes)
    else:
        out2d = _scale1d_wide(x_flat, ws, m, n_modes, dtype,
                              max_block_rows, vmem_budget_bytes)
    return out2d.reshape(*lead, n_modes)


# ---------------------------------------------------------------------------
# Self-test
# ---------------------------------------------------------------------------

if __name__ == "__main__":
    key = jax.random.PRNGKey(0)
    k1, k2, k3, k4, k5 = jax.random.split(key, 5)

    def bref(x, ws):  # exact broadcast reference (== x @ ws mathematically)
        return x.astype(jnp.float32) * ws.reshape((1,) * (x.ndim - 1) + (ws.shape[-1],))

    # Case 1: packed MXU path, n_modes=32 (pack=4), single tile, no post-kernel slices.
    n_modes = 32
    ws = make_scale1d_weights(n_modes)
    x1 = jax.random.normal(k1, (2, 8, 1), dtype=jnp.float32)
    out1 = jax.block_until_ready(scale1d(x1, ws, small_fallback_rows=0))
    assert out1.shape == (2, 8, n_modes)
    assert jnp.allclose(out1, bref(x1, ws), rtol=1e-2, atol=1e-2), "packed path mismatch"

    # Case 2: packed path with a multi-step grid (forces tiling + ragged handling).
    x2 = jax.random.normal(k2, (4, 160, 1), dtype=jnp.float32)
    out2 = jax.block_until_ready(
        scale1d(x2, ws, max_block_rows=128, small_fallback_rows=0))
    assert jnp.allclose(out2, bref(x2, ws), rtol=1e-2, atol=1e-2), "multi-tile mismatch"

    # Case 3: packed path with lane padding (n_modes=20 -> padded to 32, trimmed after).
    ws3 = make_scale1d_weights(20)
    x3 = jax.random.normal(k3, (2, 30, 1), dtype=jnp.float32)
    out3 = jax.block_until_ready(scale1d(x3, ws3, small_fallback_rows=0))
    assert jnp.allclose(out3, bref(x3, ws3), rtol=1e-2, atol=1e-2), "lane-pad mismatch"

    # Case 4: wide path (n_modes=200 > 64), lane-padded to 256 and trimmed, ragged grid.
    ws4 = make_scale1d_weights(200)
    x4 = jax.random.normal(k4, (2, 300, 1), dtype=jnp.float32)
    out4 = jax.block_until_ready(
        scale1d(x4, ws4, max_block_rows=128, small_fallback_rows=0))
    assert jnp.allclose(out4, bref(x4, ws4), rtol=1e-5, atol=1e-5), "wide path mismatch"

    # Case 5: bf16 input (exercises the 16-row sublane rounding + bf16 MXU dot).
    x5 = jax.random.normal(k5, (2, 64, 1), dtype=jnp.bfloat16)
    out5 = jax.block_until_ready(scale1d(x5, ws, small_fallback_rows=0))
    assert jnp.allclose(out5.astype(jnp.float32), bref(x5, ws),
                        rtol=5e-2, atol=5e-2), "bf16 path mismatch"

    print("KERNEL_OK")
</pallas_src>

<mosaic_0001>
module attributes {stable_mosaic.version = 11 : i64} {
  func.func @_scale1d_packed_kernel(%arg0: i32, %arg1: memref<8x4xf32, #tpu.memory_space<vmem>>, %arg2: memref<4x128xf32, #tpu.memory_space<vmem>>, %arg3: memref<8x128xf32, #tpu.memory_space<vmem>>) attributes {dimension_semantics = [#tpu.dimension_semantics<parallel>], iteration_bounds = array<i64: 1>, scalar_prefetch = 0 : i64, scratch_operands = 0 : i64, tpu.core_type = #tpu.core_type<tc>, window_params = [{transform_indices = @transform_0, window_bounds = array<i64: 8, 4>}, {pipeline_mode = #tpu.pipeline_mode<synchronous>, transform_indices = @transform_1, window_bounds = array<i64: 4, 128>}, {transform_indices = @transform_2, window_bounds = array<i64: 8, 128>}]} {
    %c0 = arith.constant 0 : index
    %c0_0 = arith.constant 0 : index
    %0 = vector.load %arg1[%c0, %c0_0] : memref<8x4xf32, #tpu.memory_space<vmem>>, vector<8x4xf32>
    %c0_1 = arith.constant 0 : index
    %c0_2 = arith.constant 0 : index
    %1 = vector.load %arg2[%c0_1, %c0_2] : memref<4x128xf32, #tpu.memory_space<vmem>>, vector<4x128xf32>
    %cst = arith.constant dense<0.000000e+00> : vector<8x128xf32>
    %2 = tpu.matmul %0, %1, %cst {dimension_numbers = #tpu.dot_dimension_numbers<[1], [0], [0], [1], [0, 0, 1, 1], [], []>} : vector<8x4xf32>, vector<4x128xf32>, vector<8x128xf32> -> vector<8x128xf32>
    %c0_3 = arith.constant 0 : index
    %c0_4 = arith.constant 0 : index
    %3 = vector.load %arg3[%c0_3, %c0_4] : memref<8x128xf32, #tpu.memory_space<vmem>>, vector<8x128xf32>
    tpu.vector_store %arg3[%c0_3, %c0_4], %2 {strides = array<i32>} : memref<8x128xf32, #tpu.memory_space<vmem>>, vector<8x128xf32>,
    return
  }
  func.func @transform_0(%arg0: i32) -> (i32, i32) {
    %c0_i32 = arith.constant 0 : i32
    %c0_i32_0 = arith.constant 0 : i32
    return %arg0, %c0_i32 : i32, i32
  }
  func.func @transform_1(%arg0: i32) -> (i32, i32) {
    %c0_i32 = arith.constant 0 : i32
    %c0_i32_0 = arith.constant 0 : i32
    %c0_i32_1 = arith.constant 0 : i32
    return %c0_i32, %c0_i32_0 : i32, i32
  }
  func.func @transform_2(%arg0: i32) -> (i32, i32) {
    %c0_i32 = arith.constant 0 : i32
    %c0_i32_0 = arith.constant 0 : i32
    return %arg0, %c0_i32 : i32, i32
  }
}

</mosaic_0001>

<llo_original>
// kernel: tpu_custom_call.1
$region0: #{tpu_custom_call.1}
  #allocation0 [shape = 'u32[]', space=smem, size = 0x4, offset = 0x4, fixed_abs, tag = 'smem constant byte address 0x4 - core index']
  #allocation1 [shape = 'u32[72,128]{1,0:T(1,128)}', space=vmem, size = 0x9000, scoped, tag = 'internal scratch']
  %s0 = inlined_call_operand.vmem [shape: f32[8,4], index: 0, kind: input, shape index: {}]
  %s1 = inlined_call_operand.vmem [shape: f32[4,128], index: 1, kind: input, shape index: {}]
  %s2 = inlined_call_operand.hbm [shape: f32[8,128], index: 2, kind: output, shape index: {}]
  %s3 = sld [smem:[#allocation0]]
  $region18: #{tpu_custom_call.1} parent=0
    _
  %s5 = ssub.s32 1, %s3
  %s6 = scalar_select 0, %s5, %s3
  $region1: #{tpu_custom_call.1} parent=0
    #allocation2 [shape = 'u8[4096]{0}', space=vmem, size = 0x1000, scoped, tag = 'output window, operand 0, single buffered']
    #allocation3 [shape = 's32[1]{0}', space=sflag, size = 0x4, scoped, tag = 'scoped memory for tpu_custom_call.1']
    %7 = vsyncpa [#allocation3], 0
    // Predicated region
    $region2: #{tpu_custom_call.1} parent=1 // pred_check
      _
    $region3: #{tpu_custom_call.1} parent=1 // pred_check_branch
      %9 = sbr.rel (0) target = $region5
    $region4: #{tpu_custom_call.1} parent=1 // pred_region
      _
    $region5: #{tpu_custom_call.1} parent=1 // pred_fallthru
      _
    // Predicated region
    $region6: #{tpu_custom_call.1} parent=1 // pred_check
      _
    $region7: #{tpu_custom_call.1} parent=1 // pred_check_branch
      %11 = sbr.rel (0) target = $region9
    $region8: #{tpu_custom_call.1} parent=1 // pred_region
      _
    $region9: #{tpu_custom_call.1} parent=1 // pred_fallthru
      _
    %v12 = vld [vmem:[%s0] sm:$0xff]
    %v13 = vld [vmem:[%s1] sm:$0xf]
    %vm14 = vcmask 31744
    %v16 = vsel %vm14, %v12, 0
    %vm18 = vcmask 1043456
    %v20 = vsel %vm18, %v13, 0
    %22 = vmatpush.msra.mxu0 0.0
    %23 = vmatpush.msra.mxu0 0.0
    %24 = vmatpush.msra.mxu0 0.0
    %25 = vmatpush.msra.mxu0 0.0
    %26 = vmatpush.msra.mxu0 0.0
    %27 = vmatpush.msra.mxu0 0.0
    %28 = vmatpush.msra.mxu0 0.0
    %29 = vmatpush.msra.mxu0 0.0
    %30 = vmatpush.msra.mxu0 0.0
    %31 = vmatpush.msra.mxu0 0.0
    %32 = vmatpush.msra.mxu0 0.0
    %33 = vmatpush.msra.mxu0 0.0
    %34 = vmatpush.msra.mxu0 0.0
    %35 = vmatpush.msra.mxu0 0.0
    %36 = vmatpush.msra.mxu0 0.0
    %37 = vmatpush.msra.mxu0 %v20
    %38 = vmatmul.f32.gmra.mxu0 %v16
    %v39 = vpop.f32.mrf.mxu0
    %v40 = vadd.f32 0.0, %v39
    %41 = vdwg.mxu0
    %42 = vst [vmem:[#allocation2] sm:$0xff] %v40
    // Predicated region
    $region10: #{tpu_custom_call.1} parent=1 // pred_check
      _
    $region11: #{tpu_custom_call.1} parent=1 // pred_check_branch
      %44 = sbr.rel (0) target = $region13
    $region12: #{tpu_custom_call.1} parent=1 // pred_region
      %46 = vsyncadd [#allocation3], 0
      %s48 = sshll.u32 [#allocation2], 4
      %s49 = int_to_ptr.vmem [resolvable:$true] %s48
      %s50 = sshll.u32 %s2, 4
      %s51 = int_to_ptr.hbm [resolvable:$true] %s50
      %53 = dma.vmem_to_hbm [thread:$0]  %s49, 128, %s51, [#allocation3]
    $region13: #{tpu_custom_call.1} parent=1 // pred_fallthru
      _
    // Predicated region
    $region14: #{tpu_custom_call.1} parent=1 // pred_check
      _
    $region15: #{tpu_custom_call.1} parent=1 // pred_check_branch
      %55 = sbr.rel (0) target = $region17
    $region16: #{tpu_custom_call.1} parent=1 // pred_region
      %57 = dma.done [#allocation3], 128
    $region17: #{tpu_custom_call.1} parent=1 // pred_fallthru
      _
    %58 = vsyncpa [#allocation3], 1

</llo_original>
